<compile_context>
chip_gen: v7x
topology: tpu7x:2x2x1
jax: 0.10.0
libtpu: 0.0.40
codegen_flags: <defaults>
</compile_context>

<pallas_src>
import jax
import jax.numpy as jnp
from jax.experimental import pallas as pl
from jax.experimental.pallas import tpu as pltpu


def _round_up(x, m):
    return (x + m - 1) // m * m


def _choose_d_tile(D, max_td=4096, min_td=512):
    """Pick a lane-dense (multiple-of-128) tile along the flattened LUT dim.

    Prefers the largest tile <= max_td that minimizes total padding of
    round_up(D, 128); a single tile is used when D fits. Returns (tile, padded_D).
    """
    d128 = _round_up(D, 128)
    if d128 <= max_td:
        return d128, d128
    best_key, best_td, best_pad = None, None, None
    for td in range(max_td, min_td - 1, -128):
        pad = _round_up(d128, td)
        key = (pad - D, -td)          # least padding first, then largest tile
        if best_key is None or key < best_key:
            best_key, best_td, best_pad = key, td, pad
    return best_td, best_pad


def _lut3d_kernel(x_ref, w1_ref, b1_ref, w2_ref, weights_ref, luts_ref, w_sc):
    d = pl.program_id(1)

    # First matmul + bias and the (lane-sparse, tiny) weights store happen
    # exactly once per B tile; the f32 result is cached in VMEM scratch for
    # every D tile of the second matmul.
    @pl.when(d == 0)
    def _():
        w = jnp.dot(x_ref[...], w1_ref[...], preferred_element_type=jnp.float32)
        w = w + b1_ref[...]                      # (1, n_ranks) broadcasts over TB
        w_sc[...] = w
        weights_ref[...] = w.astype(weights_ref.dtype)

    # Second matmul: stream one lane-dense tile of the basis-LUT bank per step.
    luts_ref[...] = jnp.dot(
        w_sc[...].astype(w2_ref.dtype), w2_ref[...],
        preferred_element_type=jnp.float32).astype(luts_ref.dtype)


def lut3d_generator_forward(x, w1, b1, w2, *, n_colors, n_vertices,
                            d_tile=None, lut_bank_dtype=None):
    """Fused forward of LUT3DGenerator.

    x  : (B, n_feats)            float32
    w1 : (n_feats, n_ranks)      float32   (transpose of torch weights_generator.weight)
    b1 : (n_ranks,)              float32   (weights_generator.bias)
    w2 : (n_ranks, D)            float32   (transpose of torch basis_luts_bank.weight)
         with D = n_colors * n_vertices ** n_colors
    d_tile        : optional explicit LUT-dim tile (multiple of 128).
    lut_bank_dtype: optional storage dtype for w2 (e.g. jnp.bfloat16) to halve
                    its HBM traffic; accumulation stays f32.
    returns: (weights (B, n_ranks), luts (B, n_colors, V, ..., V))
    """
    B, n_feats = x.shape
    n_ranks = w1.shape[1]
    D = w2.shape[1]
    assert D == n_colors * n_vertices ** n_colors

    if lut_bank_dtype is not None:
        w2 = w2.astype(lut_bank_dtype)

    # ---- tile choices ------------------------------------------------------
    TB = min(_round_up(B, 8), 128)          # full sublanes; sane MXU M dim
    B_pad = _round_up(B, TB)
    if d_tile is None:
        TD, D_pad = _choose_d_tile(D)
    else:
        TD = int(d_tile)
        assert TD % 128 == 0, "d_tile must be a multiple of 128"
        D_pad = _round_up(D, TD)

    # ---- wrapper-side padding (sliced off after the call) -------------------
    if B_pad != B:
        x = jnp.pad(x, ((0, B_pad - B), (0, 0)))
    if D_pad != D:
        w2 = jnp.pad(w2, ((0, 0), (0, D_pad - D)))

    b1_2d = b1.reshape(1, n_ranks).astype(jnp.float32)

    num_b = B_pad // TB
    num_d = D_pad // TD

    # TODO(synk): if xprof ever shows the w2 DMA exposed on v5e, deepen its
    # pipeline with pipeline_mode=pl.Buffered(3) on the w2 BlockSpec.
    weights_pad, luts_pad = pl.pallas_call(
        _lut3d_kernel,
        out_shape=(
            jax.ShapeDtypeStruct((B_pad, n_ranks), jnp.float32),
            jax.ShapeDtypeStruct((B_pad, D_pad), jnp.float32),
        ),
        grid=(num_b, num_d),
        in_specs=[
            pl.BlockSpec((TB, n_feats), lambda b, d: (b, 0)),       # x
            pl.BlockSpec((n_feats, n_ranks), lambda b, d: (0, 0)),  # w1 (resident)
            pl.BlockSpec((1, n_ranks), lambda b, d: (0, 0)),        # b1 (resident)
            pl.BlockSpec((n_ranks, TD), lambda b, d: (0, d)),       # w2 (streamed)
        ],
        out_specs=(
            pl.BlockSpec((TB, n_ranks), lambda b, d: (b, 0)),       # weights
            pl.BlockSpec((TB, TD), lambda b, d: (b, d)),            # luts (flat)
        ),
        scratch_shapes=[pltpu.VMEM((TB, n_ranks), jnp.float32)],
        compiler_params=pltpu.CompilerParams(
            # B tiles are independent -> parallel (megacore on v7x).
            # D revisits the weights output block and reuses the per-B-tile
            # scratch -> must stay "arbitrary".
            dimension_semantics=("parallel", "arbitrary")),
    )(x, w1, b1_2d, w2)

    weights = weights_pad[:B]
    luts = luts_pad[:B, :D].reshape((B, n_colors) + (n_vertices,) * n_colors)
    return weights, luts


def make_params(n_colors, n_vertices, n_feats, n_ranks):
    """Deterministic parameter init mirroring LUT3DGenerator.init_weights:
    LUT-bank rank 0 = identity LUT, other ranks = zero; generator bias = ones;
    generator weight = small deterministic random."""
    key = jax.random.PRNGKey(0)
    w1 = jax.random.normal(key, (n_feats, n_ranks), jnp.float32) * 0.02
    b1 = jnp.ones((n_ranks,), jnp.float32)

    axes = jnp.meshgrid(*[jnp.arange(n_vertices, dtype=jnp.float32)
                          for _ in range(n_colors)], indexing="ij")
    ident = jnp.stack(axes, axis=0) / (n_vertices - 1)          # (C, V, ..., V)
    ident = jnp.flip(ident, axis=0)
    D = n_colors * n_vertices ** n_colors
    w2 = jnp.zeros((n_ranks, D), jnp.float32)
    w2 = w2.at[0].set(ident.reshape(-1))
    return w1, b1, w2


# TODO(synk): regularizations() (training-time TV/monotonicity penalty on the
# LUT bank) is not part of forward() and is left to plain JAX.


if __name__ == "__main__":
    # Small, forward-consistent shapes.
    B, n_colors, n_vertices, n_feats, n_ranks = 2, 3, 8, 32, 8
    D = n_colors * n_vertices ** n_colors  # 1536

    key = jax.random.PRNGKey(0)
    x = jax.random.normal(jax.random.fold_in(key, 1), (B, n_feats), jnp.float32)
    # Fully random parameters for a strong numerical check.
    w1 = jax.random.normal(jax.random.fold_in(key, 2), (n_feats, n_ranks),
                           jnp.float32) * 0.1
    b1 = jax.random.normal(jax.random.fold_in(key, 3), (n_ranks,), jnp.float32)
    w2 = jax.random.normal(jax.random.fold_in(key, 4), (n_ranks, D),
                           jnp.float32) * 0.1

    # Pure-JAX reference.
    ref_w = x @ w1 + b1
    ref_luts = (ref_w @ w2).reshape((B, n_colors) + (n_vertices,) * n_colors)

    # 1) Default tiling (single lane-dense D tile for this small D).
    weights, luts = jax.block_until_ready(
        lut3d_generator_forward(x, w1, b1, w2,
                                n_colors=n_colors, n_vertices=n_vertices))
    assert weights.shape == (B, n_ranks)
    assert luts.shape == (B, n_colors, n_vertices, n_vertices, n_vertices)
    assert jnp.allclose(weights, ref_w, atol=1e-5, rtol=1e-5)
    assert jnp.allclose(luts, ref_luts, atol=1e-5, rtol=1e-5)

    # 2) Forced multi-tile D grid + D padding path (1536 -> 2048, two 1024
    #    tiles) to exercise the pl.when(d == 0) guard, scratch reuse and the
    #    slice-off of padding.
    weights2, luts2 = jax.block_until_ready(
        lut3d_generator_forward(x, w1, b1, w2, n_colors=n_colors,
                                n_vertices=n_vertices, d_tile=1024))
    assert jnp.allclose(weights2, ref_w, atol=1e-5, rtol=1e-5)
    assert jnp.allclose(luts2, ref_luts, atol=1e-5, rtol=1e-5)

    # 3) init_weights-style parameters (identity LUT in rank 0), default tiling.
    w1i, b1i, w2i = make_params(n_colors, n_vertices, n_feats, n_ranks)
    ref_wi = x @ w1i + b1i
    ref_lutsi = (ref_wi @ w2i).reshape((B, n_colors) + (n_vertices,) * n_colors)
    weights3, luts3 = jax.block_until_ready(
        lut3d_generator_forward(x, w1i, b1i, w2i,
                                n_colors=n_colors, n_vertices=n_vertices))
    assert jnp.allclose(weights3, ref_wi, atol=1e-5, rtol=1e-5)
    assert jnp.allclose(luts3, ref_lutsi, atol=1e-5, rtol=1e-5)

    print("KERNEL_OK")
</pallas_src>

<mosaic_0001>
module attributes {stable_mosaic.version = 11 : i64} {
  func.func @_lut3d_kernel(%arg0: i32, %arg1: i32, %arg2: memref<8x32xf32, #tpu.memory_space<vmem>>, %arg3: memref<32x8xf32, #tpu.memory_space<vmem>>, %arg4: memref<1x8xf32, #tpu.memory_space<vmem>>, %arg5: memref<8x1536xf32, #tpu.memory_space<vmem>>, %arg6: memref<8x8xf32, #tpu.memory_space<vmem>>, %arg7: memref<8x1536xf32, #tpu.memory_space<vmem>>, %arg8: memref<8x8xf32, #tpu.memory_space<vmem>>) attributes {dimension_semantics = [#tpu.dimension_semantics<parallel>, #tpu.dimension_semantics<arbitrary>], iteration_bounds = array<i64: 1, 1>, scalar_prefetch = 0 : i64, scratch_operands = 1 : i64, tpu.core_type = #tpu.core_type<tc>, window_params = [{transform_indices = @transform_0, window_bounds = array<i64: 8, 32>}, {pipeline_mode = #tpu.pipeline_mode<synchronous>, transform_indices = @transform_1, window_bounds = array<i64: 32, 8>}, {pipeline_mode = #tpu.pipeline_mode<synchronous>, transform_indices = @transform_2, window_bounds = array<i64: 1, 8>}, {transform_indices = @transform_3, window_bounds = array<i64: 8, 1536>}, {transform_indices = @transform_4, window_bounds = array<i64: 8, 8>}, {transform_indices = @transform_5, window_bounds = array<i64: 8, 1536>}]} {
    %c0_i32 = arith.constant 0 : i32
    %0 = arith.cmpi eq, %arg1, %c0_i32 : i32
    %1 = arith.extui %0 : i1 to i32
    %c0_i32_0 = arith.constant 0 : i32
    %2 = arith.cmpi ne, %1, %c0_i32_0 : i32
    scf.if %2 {
      %c0_6 = arith.constant 0 : index
      %c0_7 = arith.constant 0 : index
      %7 = vector.load %arg2[%c0_6, %c0_7] : memref<8x32xf32, #tpu.memory_space<vmem>>, vector<8x32xf32>
      %c0_8 = arith.constant 0 : index
      %c0_9 = arith.constant 0 : index
      %8 = vector.load %arg3[%c0_8, %c0_9] : memref<32x8xf32, #tpu.memory_space<vmem>>, vector<32x8xf32>
      %cst_10 = arith.constant dense<0.000000e+00> : vector<8x8xf32>
      %9 = tpu.matmul %7, %8, %cst_10 {dimension_numbers = #tpu.dot_dimension_numbers<[1], [0], [0], [1], [0, 0, 1, 1], [], []>} : vector<8x32xf32>, vector<32x8xf32>, vector<8x8xf32> -> vector<8x8xf32>
      %c0_11 = arith.constant 0 : index
      %c0_12 = arith.constant 0 : index
      %10 = vector.load %arg4[%c0_11, %c0_12] : memref<1x8xf32, #tpu.memory_space<vmem>>, vector<1x8xf32>
      %11 = vector.broadcast %10 : vector<1x8xf32> to vector<8x8xf32>
      %12 = arith.addf %9, %11 : vector<8x8xf32>
      %c0_13 = arith.constant 0 : index
      %c0_14 = arith.constant 0 : index
      %13 = vector.load %arg8[%c0_13, %c0_14] : memref<8x8xf32, #tpu.memory_space<vmem>>, vector<8x8xf32>
      tpu.vector_store %arg8[%c0_13, %c0_14], %12 {strides = array<i32>} : memref<8x8xf32, #tpu.memory_space<vmem>>, vector<8x8xf32>,
      %c0_15 = arith.constant 0 : index
      %c0_16 = arith.constant 0 : index
      %14 = vector.load %arg6[%c0_15, %c0_16] : memref<8x8xf32, #tpu.memory_space<vmem>>, vector<8x8xf32>
      tpu.vector_store %arg6[%c0_15, %c0_16], %12 {strides = array<i32>} : memref<8x8xf32, #tpu.memory_space<vmem>>, vector<8x8xf32>,
    } else {
    }
    %c0 = arith.constant 0 : index
    %c0_1 = arith.constant 0 : index
    %3 = vector.load %arg8[%c0, %c0_1] : memref<8x8xf32, #tpu.memory_space<vmem>>, vector<8x8xf32>
    %c0_2 = arith.constant 0 : index
    %c0_3 = arith.constant 0 : index
    %4 = vector.load %arg5[%c0_2, %c0_3] : memref<8x1536xf32, #tpu.memory_space<vmem>>, vector<8x1536xf32>
    %cst = arith.constant dense<0.000000e+00> : vector<8x1536xf32>
    %5 = tpu.matmul %3, %4, %cst {dimension_numbers = #tpu.dot_dimension_numbers<[1], [0], [0], [1], [0, 0, 1, 1], [], []>} : vector<8x8xf32>, vector<8x1536xf32>, vector<8x1536xf32> -> vector<8x1536xf32>
    %c0_4 = arith.constant 0 : index
    %c0_5 = arith.constant 0 : index
    %6 = vector.load %arg7[%c0_4, %c0_5] : memref<8x1536xf32, #tpu.memory_space<vmem>>, vector<8x1536xf32>
    tpu.vector_store %arg7[%c0_4, %c0_5], %5 {strides = array<i32>} : memref<8x1536xf32, #tpu.memory_space<vmem>>, vector<8x1536xf32>,
    return
  }
  func.func @transform_0(%arg0: i32, %arg1: i32) -> (i32, i32) {
    %c0_i32 = arith.constant 0 : i32
    %c0_i32_0 = arith.constant 0 : i32
    return %arg0, %c0_i32 : i32, i32
  }
  func.func @transform_1(%arg0: i32, %arg1: i32) -> (i32, i32) {
    %c0_i32 = arith.constant 0 : i32
    %c0_i32_0 = arith.constant 0 : i32
    %c0_i32_1 = arith.constant 0 : i32
    return %c0_i32, %c0_i32_0 : i32, i32
  }
  func.func @transform_2(%arg0: i32, %arg1: i32) -> (i32, i32) {
    %c0_i32 = arith.constant 0 : i32
    %c0_i32_0 = arith.constant 0 : i32
    %c0_i32_1 = arith.constant 0 : i32
    return %c0_i32, %c0_i32_0 : i32, i32
  }
  func.func @transform_3(%arg0: i32, %arg1: i32) -> (i32, i32) {
    %c0_i32 = arith.constant 0 : i32
    %c0_i32_0 = arith.constant 0 : i32
    return %c0_i32, %arg1 : i32, i32
  }
  func.func @transform_4(%arg0: i32, %arg1: i32) -> (i32, i32) {
    %c0_i32 = arith.constant 0 : i32
    %c0_i32_0 = arith.constant 0 : i32
    return %arg0, %c0_i32 : i32, i32
  }
  func.func @transform_5(%arg0: i32, %arg1: i32) -> (i32, i32) {
    %c0_i32 = arith.constant 0 : i32
    return %arg0, %arg1 : i32, i32
  }
}

</mosaic_0001>

<llo_original>
// kernel: tpu_custom_call.1
$region0: #{tpu_custom_call.1}
  #allocation0 [shape = 'u32[]', space=smem, size = 0x4, offset = 0x4, fixed_abs, tag = 'smem constant byte address 0x4 - core index']
  #allocation1 [shape = 'u32[144,128]{1,0:T(1,128)}', space=vmem, size = 0x12000, scoped, tag = 'internal scratch']
  #allocation2 [shape = 'f32[8,8]{1,0:T(8,128)}', space=vmem, size = 0x1000, scoped, tag = 'scratch operand']
  %s0 = inlined_call_operand.vmem [shape: f32[8,32], index: 0, kind: input, shape index: {}]
  %s1 = inlined_call_operand.vmem [shape: f32[32,8], index: 1, kind: input, shape index: {}]
  %s2 = inlined_call_operand.vmem [shape: f32[1,8], index: 2, kind: input, shape index: {}]
  %s3 = inlined_call_operand.hbm [shape: f32[8,1536], index: 3, kind: input, shape index: {}]
  %s4 = inlined_call_operand.hbm [shape: f32[8,8], index: 4, kind: output, shape index: {0}]
  %s5 = inlined_call_operand.hbm [shape: f32[8,1536], index: 5, kind: output, shape index: {1}]
  %6 = xla_tuple %s4, %s5
  %s7 = sld [smem:[#allocation0]]
  $region42: #{tpu_custom_call.1} parent=0
    _
  %s9 = ssub.s32 1, %s7
  %s10 = scalar_select 0, %s9, %s7
  $region1: #{tpu_custom_call.1} parent=0
    #allocation3 [shape = 'u8[49152]{0}', space=vmem, size = 0xc000, scoped, tag = 'input window, operand 3, single buffered']
    #allocation4 [shape = 's32[1]{0}', space=sflag, size = 0x4, scoped, tag = 'scoped memory for tpu_custom_call.1']
    #allocation5 [shape = 's32[1]{0}', space=sflag, size = 0x4, scoped, tag = 'scoped memory for tpu_custom_call.1']
    #allocation6 [shape = 'u8[4096]{0}', space=vmem, size = 0x1000, scoped, tag = 'output window, operand 0, single buffered']
    #allocation7 [shape = 'u8[49152]{0}', space=vmem, size = 0xc000, scoped, tag = 'output window, operand 1, single buffered']
    #allocation8 [shape = 's32[1]{0}', space=sflag, size = 0x4, scoped, tag = 'scoped memory for tpu_custom_call.1']
    %11 = vsyncpa [#allocation4], 0
    %12 = vsyncpa [#allocation5], 0
    %13 = vsyncpa [#allocation8], 0
    // Predicated region
    $region2: #{tpu_custom_call.1} parent=1 // pred_check
      _
    $region3: #{tpu_custom_call.1} parent=1 // pred_check_branch
      %15 = sbr.rel (0) target = $region5
    $region4: #{tpu_custom_call.1} parent=1 // pred_region
      _
    $region5: #{tpu_custom_call.1} parent=1 // pred_fallthru
      _
    // Predicated region
    $region6: #{tpu_custom_call.1} parent=1 // pred_check
      _
    $region7: #{tpu_custom_call.1} parent=1 // pred_check_branch
      %17 = sbr.rel (0) target = $region9
    $region8: #{tpu_custom_call.1} parent=1 // pred_region
      _
    $region9: #{tpu_custom_call.1} parent=1 // pred_fallthru
      _
    // Predicated region
    $region10: #{tpu_custom_call.1} parent=1 // pred_check
      _
    $region11: #{tpu_custom_call.1} parent=1 // pred_check_branch
      %19 = sbr.rel (0) target = $region13
    $region12: #{tpu_custom_call.1} parent=1 // pred_region
      _
    $region13: #{tpu_custom_call.1} parent=1 // pred_fallthru
      _
    // Predicated region
    $region14: #{tpu_custom_call.1} parent=1 // pred_check
      _
    $region15: #{tpu_custom_call.1} parent=1 // pred_check_branch
      %21 = sbr.rel (0) target = $region17
    $region16: #{tpu_custom_call.1} parent=1 // pred_region
      %s23 = ssub.s32 1536, 1536
      %24 = vsyncadd [#allocation4], %s23
      %s26 = sshll.u32 [#allocation3], 4
      %s27 = int_to_ptr.vmem [resolvable:$true] %s26
      %29 = dma.hbm_to_vmem [thread:$0]  %s3, 1536, %s27, [#allocation4]
    $region17: #{tpu_custom_call.1} parent=1 // pred_fallthru
      _
    // Predicated region
    $region18: #{tpu_custom_call.1} parent=1 // pred_check
      _
    $region19: #{tpu_custom_call.1} parent=1 // pred_check_branch
      %31 = sbr.rel (0) target = $region21
    $region20: #{tpu_custom_call.1} parent=1 // pred_region
      %32 = dma.done [#allocation4], 1536
    $region21: #{tpu_custom_call.1} parent=1 // pred_fallthru
      _
    %p33 = scmp.eq.s32.totalorder 0, 0
    // Predicated region
    $region22: #{tpu_custom_call.1} parent=1 // pred_check
      %p34 = pneg %p33
    $region23: #{tpu_custom_call.1} parent=1 // pred_check_branch
      %36 = sbr.rel (%p34) target = $region25
    $region24: #{tpu_custom_call.1} parent=1 // pred_region
      %v37 = vld [vmem:[%s0] sm:$0xff]
      %v38 = vld [vmem:[%s1] sm:$0xff]
      %v39 = vld [vmem:[%s1 + $0x8] sm:$0xff]
      %v40 = vld [vmem:[%s1 + $0x10] sm:$0xff]
      %v41 = vld [vmem:[%s1 + $0x18] sm:$0xff]
      %v42 = vld [vmem:[%s2] sm:$0x1]
      %v44 = vlaneseq
      %v45 = vshrl.u32 %v44, 7
      %v46 = vsub.s32 0, %v45
      %v47 = vrot.slane %v42, %v46
      %vm49 = vcmask 261120
      %v51 = vsel %vm49, %v37, 0
      %53 = vmatprep.subr.mxu0 0.0
      %54 = vmatpush1.msra.mxu0 %v38
      %55 = vmatprep.subr.mxu0 0.0
      %56 = vmatpush1.msra.mxu0 %v39
      %57 = vmatprep.subr.mxu0 0.0
      %58 = vmatpush1.msra.mxu0 %v40
      %59 = vmatprep.subr.mxu0 0.0
      %60 = vmatpush1.msra.mxu0 %v41
      %61 = vmatprep.subr.mxu0 0.0
      %62 = vmatpush1.msra.mxu0 0.0
      %63 = vmatprep.subr.mxu0 0.0
      %64 = vmatpush1.msra.mxu0 0.0
      %65 = vmatprep.subr.mxu0 0.0
      %66 = vmatpush1.msra.mxu0 0.0
      %67 = vmatprep.subr.mxu0 0.0
      %68 = vmatpush1.msra.mxu0 0.0
      %69 = vmatprep.subr.mxu0 0.0
      %70 = vmatpush1.msra.mxu0 0.0
      %71 = vmatprep.subr.mxu0 0.0
      %72 = vmatpush1.msra.mxu0 0.0
      %73 = vmatprep.subr.mxu0 0.0
      %74 = vmatpush1.msra.mxu0 0.0
      %75 = vmatprep.subr.mxu0 0.0
      %76 = vmatpush1.msra.mxu0 0.0
      %77 = vmatprep.subr.mxu0 0.0
      %78 = vmatpush1.msra.mxu0 0.0
      %79 = vmatprep.subr.mxu0 0.0
      %80 = vmatpush1.msra.mxu0 0.0
      %81 = vmatprep.subr.mxu0 0.0
      %82 = vmatpush1.msra.mxu0 0.0
      %83 = vmatprep.subr.mxu0 0.0
      %84 = vmatpush1.msra.mxu0 0.0
      %85 = vmatprep.subr.mxu0 0.0
      %86 = vmatpush1.msra.mxu0 0.0
      %87 = vmatprep.subr.mxu0 0.0
      %88 = vmatpush1.msra.mxu0 0.0
      %89 = vmatprep.subr.mxu0 0.0
      %90 = vmatpush1.msra.mxu0 0.0
      %91 = vmatprep.subr.mxu0 0.0
      %92 = vmatpush1.msra.mxu0 0.0
      %93 = vmatprep.subr.mxu0 0.0
      %94 = vmatpush1.msra.mxu0 0.0
      %95 = vmatprep.subr.mxu0 0.0
      %96 = vmatpush1.msra.mxu0 0.0
      %97 = vmatprep.subr.mxu0 0.0
      %98 = vmatpush1.msra.mxu0 0.0
      %99 = vmatprep.subr.mxu0 0.0
      %100 = vmatpush1.msra.mxu0 0.0
      %101 = vmatprep.subr.mxu0 0.0
      %102 = vmatpush1.msra.mxu0 0.0
      %103 = vmatprep.subr.mxu0 0.0
      %104 = vmatpush1.msra.mxu0 0.0
      %105 = vmatprep.subr.mxu0 0.0
      %106 = vmatpush1.msra.mxu0 0.0
      %107 = vmatprep.subr.mxu0 0.0
      %108 = vmatpush1.msra.mxu0 0.0
      %109 = vmatprep.subr.mxu0 0.0
      %110 = vmatpush1.msra.mxu0 0.0
      %111 = vmatprep.subr.mxu0 0.0
      %112 = vmatpush1.msra.mxu0 0.0
      %113 = vmatprep.subr.mxu0 0.0
      %114 = vmatpush1.msra.mxu0 0.0
      %115 = vmatprep.subr.mxu0 0.0
      %116 = vmatpush1.msra.mxu0 0.0
      %117 = vmatprep.mubr.f32.mxu0 0.0
      %118 = vmatmul.mubr.f32.gmra.mrb[0].mxu0 %v51
      %v119 = vpop.f32.mrb[0].mxu0
      %v120 = vadd.f32 %v47, %v119
      %v121 = vpop.f32.mrb[0].mxu0
      %122 = vdwg.mxu0
      %vm123 = vcmask 64512
      %124 = vst.msk [vmem:[#allocation2] sm:$0xff] %vm123, %v120
      %125 = vst.msk [vmem:[#allocation6] sm:$0xff] %vm123, %v120
    $region25: #{tpu_custom_call.1} parent=1 // pred_fallthru
      _
    %v126 = vld [vmem:[#allocation2] sm:$0xff]
    %v127 = vld [vmem:[#allocation3] sm:$0xff]
    %v128 = vld [vmem:[#allocation3 + $0x8] sm:$0xff]
    %v129 = vld [vmem:[#allocation3 + $0x10] sm:$0xff]
    %v130 = vld [vmem:[#allocation3 + $0x18] sm:$0xff]
    %v131 = vld [vmem:[#allocation3 + $0x20] sm:$0xff]
    %v132 = vld [vmem:[#allocation3 + $0x28] sm:$0xff]
    %v133 = vld [vmem:[#allocation3 + $0x30] sm:$0xff]
    %v134 = vld [vmem:[#allocation3 + $0x38] sm:$0xff]
    %v135 = vld [vmem:[#allocation3 + $0x40] sm:$0xff]
    %v136 = vld [vmem:[#allocation3 + $0x48] sm:$0xff]
    %v137 = vld [vmem:[#allocation3 + $0x50] sm:$0xff]
    %v138 = vld [vmem:[#allocation3 + $0x58] sm:$0xff]
    %vm139 = vcmask 64512
    %v141 = vsel %vm139, %v126, 0
    %143 = vmatprep.subr.mxu0 %v128
    %144 = vmatpush1.msra.mxu0 %v127
    %145 = vmatprep.subr.mxu0 0.0
    %146 = vmatpush1.msra.mxu0 0.0
    %147 = vmatprep.subr.mxu0 0.0
    %148 = vmatpush1.msra.mxu0 0.0
    %149 = vmatprep.subr.mxu0 0.0
    %150 = vmatpush1.msra.mxu0 0.0
    %151 = vmatprep.subr.mxu0 0.0
    %152 = vmatpush1.msra.mxu0 0.0
    %153 = vmatprep.subr.mxu0 0.0
    %154 = vmatpush1.msra.mxu0 0.0
    %155 = vmatprep.subr.mxu0 0.0
    %156 = vmatpush1.msra.mxu0 0.0
    %157 = vmatprep.subr.mxu0 0.0
    %158 = vmatpush1.msra.mxu0 0.0
    %159 = vmatprep.subr.mxu0 0.0
    %160 = vmatpush1.msra.mxu0 0.0
    %161 = vmatprep.subr.mxu0 0.0
    %162 = vmatpush1.msra.mxu0 0.0
    %163 = vmatprep.subr.mxu0 0.0
    %164 = vmatpush1.msra.mxu0 0.0
    %165 = vmatprep.subr.mxu0 0.0
    %166 = vmatpush1.msra.mxu0 0.0
    %167 = vmatprep.subr.mxu0 0.0
    %168 = vmatpush1.msra.mxu0 0.0
    %169 = vmatprep.subr.mxu0 0.0
    %170 = vmatpush1.msra.mxu0 0.0
    %171 = vmatprep.subr.mxu0 0.0
    %172 = vmatpush1.msra.mxu0 0.0
    %173 = vmatprep.subr.mxu0 0.0
    %174 = vmatpush1.msra.mxu0 0.0
    %175 = vmatprep.subr.mxu0 0.0
    %176 = vmatpush1.msra.mxu0 0.0
    %177 = vmatprep.subr.mxu0 0.0
    %178 = vmatpush1.msra.mxu0 0.0
    %179 = vmatprep.subr.mxu0 0.0
    %180 = vmatpush1.msra.mxu0 0.0
    %181 = vmatprep.subr.mxu0 0.0
    %182 = vmatpush1.msra.mxu0 0.0
    %183 = vmatprep.subr.mxu0 0.0
    %184 = vmatpush1.msra.mxu0 0.0
    %185 = vmatprep.subr.mxu0 0.0
    %186 = vmatpush1.msra.mxu0 0.0
    %187 = vmatprep.subr.mxu0 0.0
    %188 = vmatpush1.msra.mxu0 0.0
    %189 = vmatprep.subr.mxu0 0.0
    %190 = vmatpush1.msra.mxu0 0.0
    %191 = vmatprep.subr.mxu0 0.0
    %192 = vmatpush1.msra.mxu0 0.0
    %193 = vmatprep.subr.mxu0 0.0
    %194 = vmatpush1.msra.mxu0 0.0
    %195 = vmatprep.subr.mxu0 0.0
    %196 = vmatpush1.msra.mxu0 0.0
    %197 = vmatprep.subr.mxu0 0.0
    %198 = vmatpush1.msra.mxu0 0.0
    %199 = vmatprep.subr.mxu0 0.0
    %200 = vmatpush1.msra.mxu0 0.0
    %201 = vmatprep.subr.mxu0 0.0
    %202 = vmatpush1.msra.mxu0 0.0
    %203 = vmatprep.subr.mxu0 0.0
    %204 = vmatpush1.msra.mxu0 0.0
    %205 = vmatprep.subr.mxu0 0.0
    %206 = vmatpush1.msra.mxu0 0.0
    %207 = vmatprep.mubr.f32.mxu0 0.0
    %208 = vmatmul.mubr.f32.gmra.mrb[0].mxu0 %v141
    %v209 = vpop.f32.mrb[0].mxu0
    %v210 = vadd.f32 0.0, %v209
    %v211 = vpop.f32.mrb[0].mxu0
    %v212 = vadd.f32 0.0, %v211
    %213 = vdwg.mxu0
    %214 = vmatprep.subr.mxu0 %v130
    %215 = vmatpush1.msra.mxu0 %v129
    %216 = vmatprep.subr.mxu0 0.0
    %217 = vmatpush1.msra.mxu0 0.0
    %218 = vmatprep.subr.mxu0 0.0
    %219 = vmatpush1.msra.mxu0 0.0
    %220 = vmatprep.subr.mxu0 0.0
    %221 = vmatpush1.msra.mxu0 0.0
    %222 = vmatprep.subr.mxu0 0.0
    %223 = vmatpush1.msra.mxu0 0.0
    %224 = vmatprep.subr.mxu0 0.0
    %225 = vmatpush1.msra.mxu0 0.0
    %226 = vmatprep.subr.mxu0 0.0
    %227 = vmatpush1.msra.mxu0 0.0
    %228 = vmatprep.subr.mxu0 0.0
    %229 = vmatpush1.msra.mxu0 0.0
    %230 = vmatprep.subr.mxu0 0.0
    %231 = vmatpush1.msra.mxu0 0.0
    %232 = vmatprep.subr.mxu0 0.0
    %233 = vmatpush1.msra.mxu0 0.0
    %234 = vmatprep.subr.mxu0 0.0
    %235 = vmatpush1.msra.mxu0 0.0
    %236 = vmatprep.subr.mxu0 0.0
    %237 = vmatpush1.msra.mxu0 0.0
    %238 = vmatprep.subr.mxu0 0.0
    %239 = vmatpush1.msra.mxu0 0.0
    %240 = vmatprep.subr.mxu0 0.0
    %241 = vmatpush1.msra.mxu0 0.0
    %242 = vmatprep.subr.mxu0 0.0
    %243 = vmatpush1.msra.mxu0 0.0
    %244 = vmatprep.subr.mxu0 0.0
    %245 = vmatpush1.msra.mxu0 0.0
    %246 = vmatprep.subr.mxu0 0.0
    %247 = vmatpush1.msra.mxu0 0.0
    %248 = vmatprep.subr.mxu0 0.0
    %249 = vmatpush1.msra.mxu0 0.0
    %250 = vmatprep.subr.mxu0 0.0
    %251 = vmatpush1.msra.mxu0 0.0
    %252 = vmatprep.subr.mxu0 0.0
    %253 = vmatpush1.msra.mxu0 0.0
    %254 = vmatprep.subr.mxu0 0.0
    %255 = vmatpush1.msra.mxu0 0.0
    %256 = vmatprep.subr.mxu0 0.0
    %257 = vmatpush1.msra.mxu0 0.0
    %258 = vmatprep.subr.mxu0 0.0
    %259 = vmatpush1.msra.mxu0 0.0
    %260 = vmatprep.subr.mxu0 0.0
    %261 = vmatpush1.msra.mxu0 0.0
    %262 = vmatprep.subr.mxu0 0.0
    %263 = vmatpush1.msra.mxu0 0.0
    %264 = vmatprep.subr.mxu0 0.0
    %265 = vmatpush1.msra.mxu0 0.0
    %266 = vmatprep.subr.mxu0 0.0
    %267 = vmatpush1.msra.mxu0 0.0
    %268 = vmatprep.subr.mxu0 0.0
    %269 = vmatpush1.msra.mxu0 0.0
    %270 = vmatprep.subr.mxu0 0.0
    %271 = vmatpush1.msra.mxu0 0.0
    %272 = vmatprep.subr.mxu0 0.0
    %273 = vmatpush1.msra.mxu0 0.0
    %274 = vmatprep.subr.mxu0 0.0
    %275 = vmatpush1.msra.mxu0 0.0
    %276 = vmatprep.subr.mxu0 0.0
    %277 = vmatpush1.msra.mxu0 0.0
    %278 = vmatprep.mubr.f32.mxu0 0.0
    %279 = vmatmul.mubr.f32.gmra.mrb[0].mxu0 %v141
    %v280 = vpop.f32.mrb[0].mxu0
    %v281 = vadd.f32 0.0, %v280
    %v282 = vpop.f32.mrb[0].mxu0
    %v283 = vadd.f32 0.0, %v282
    %284 = vdwg.mxu0
    %285 = vmatprep.subr.mxu0 %v132
    %286 = vmatpush1.msra.mxu0 %v131
    %287 = vmatprep.subr.mxu0 0.0
    %288 = vmatpush1.msra.mxu0 0.0
    %289 = vmatprep.subr.mxu0 0.0
    %290 = vmatpush1.msra.mxu0 0.0
    %291 = vmatprep.subr.mxu0 0.0
    %292 = vmatpush1.msra.mxu0 0.0
    %293 = vmatprep.subr.mxu0 0.0
    %294 = vmatpush1.msra.mxu0 0.0
    %295 = vmatprep.subr.mxu0 0.0
    %296 = vmatpush1.msra.mxu0 0.0
    %297 = vmatprep.subr.mxu0 0.0
    %298 = vmatpush1.msra.mxu0 0.0
    %299 = vmatprep.subr.mxu0 0.0
    %300 = vmatpush1.msra.mxu0 0.0
    %301 = vmatprep.subr.mxu0 0.0
    %302 = vmatpush1.msra.mxu0 0.0
    %303 = vmatprep.subr.mxu0 0.0
    %304 = vmatpush1.msra.mxu0 0.0
    %305 = vmatprep.subr.mxu0 0.0
    %306 = vmatpush1.msra.mxu0 0.0
    %307 = vmatprep.subr.mxu0 0.0
    %308 = vmatpush1.msra.mxu0 0.0
    %309 = vmatprep.subr.mxu0 0.0
    %310 = vmatpush1.msra.mxu0 0.0
    %311 = vmatprep.subr.mxu0 0.0
    %312 = vmatpush1.msra.mxu0 0.0
    %313 = vmatprep.subr.mxu0 0.0
    %314 = vmatpush1.msra.mxu0 0.0
    %315 = vmatprep.subr.mxu0 0.0
    %316 = vmatpush1.msra.mxu0 0.0
    %317 = vmatprep.subr.mxu0 0.0
    %318 = vmatpush1.msra.mxu0 0.0
    %319 = vmatprep.subr.mxu0 0.0
    %320 = vmatpush1.msra.mxu0 0.0
    %321 = vmatprep.subr.mxu0 0.0
    %322 = vmatpush1.msra.mxu0 0.0
    %323 = vmatprep.subr.mxu0 0.0
    %324 = vmatpush1.msra.mxu0 0.0
    %325 = vmatprep.subr.mxu0 0.0
    %326 = vmatpush1.msra.mxu0 0.0
    %327 = vmatprep.subr.mxu0 0.0
    %328 = vmatpush1.msra.mxu0 0.0
    %329 = vmatprep.subr.mxu0 0.0
    %330 = vmatpush1.msra.mxu0 0.0
    %331 = vmatprep.subr.mxu0 0.0
    %332 = vmatpush1.msra.mxu0 0.0
    %333 = vmatprep.subr.mxu0 0.0
    %334 = vmatpush1.msra.mxu0 0.0
    %335 = vmatprep.subr.mxu0 0.0
    %336 = vmatpush1.msra.mxu0 0.0
    %337 = vmatprep.subr.mxu0 0.0
    %338 = vmatpush1.msra.mxu0 0.0
    %339 = vmatprep.subr.mxu0 0.0
    %340 = vmatpush1.msra.mxu0 0.0
    %341 = vmatprep.subr.mxu0 0.0
    %342 = vmatpush1.msra.mxu0 0.0
    %343 = vmatprep.subr.mxu0 0.0
    %344 = vmatpush1.msra.mxu0 0.0
    %345 = vmatprep.subr.mxu0 0.0
    %346 = vmatpush1.msra.mxu0 0.0
    %347 = vmatprep.subr.mxu0 0.0
    %348 = vmatpush1.msra.mxu0 0.0
    %349 = vmatprep.mubr.f32.mxu0 0.0
    %350 = vmatmul.mubr.f32.gmra.mrb[0].mxu0 %v141
    %v351 = vpop.f32.mrb[0].mxu0
    %v352 = vadd.f32 0.0, %v351
    %v353 = vpop.f32.mrb[0].mxu0
    %v354 = vadd.f32 0.0, %v353
    %355 = vdwg.mxu0
    %356 = vmatprep.subr.mxu0 %v134
    %357 = vmatpush1.msra.mxu0 %v133
    %358 = vmatprep.subr.mxu0 0.0
    %359 = vmatpush1.msra.mxu0 0.0
    %360 = vmatprep.subr.mxu0 0.0
    %361 = vmatpush1.msra.mxu0 0.0
    %362 = vmatprep.subr.mxu0 0.0
    %363 = vmatpush1.msra.mxu0 0.0
    %364 = vmatprep.subr.mxu0 0.0
    %365 = vmatpush1.msra.mxu0 0.0
    %366 = vmatprep.subr.mxu0 0.0
    %367 = vmatpush1.msra.mxu0 0.0
    %368 = vmatprep.subr.mxu0 0.0
    %369 = vmatpush1.msra.mxu0 0.0
    %370 = vmatprep.subr.mxu0 0.0
    %371 = vmatpush1.msra.mxu0 0.0
    %372 = vmatprep.subr.mxu0 0.0
    %373 = vmatpush1.msra.mxu0 0.0
    %374 = vmatprep.subr.mxu0 0.0
    %375 = vmatpush1.msra.mxu0 0.0
    %376 = vmatprep.subr.mxu0 0.0
    %377 = vmatpush1.msra.mxu0 0.0
    %378 = vmatprep.subr.mxu0 0.0
    %379 = vmatpush1.msra.mxu0 0.0
    %380 = vmatprep.subr.mxu0 0.0
    %381 = vmatpush1.msra.mxu0 0.0
    %382 = vmatprep.subr.mxu0 0.0
    %383 = vmatpush1.msra.mxu0 0.0
    %384 = vmatprep.subr.mxu0 0.0
    %385 = vmatpush1.msra.mxu0 0.0
    %386 = vmatprep.subr.mxu0 0.0
    %387 = vmatpush1.msra.mxu0 0.0
    %388 = vmatprep.subr.mxu0 0.0
    %389 = vmatpush1.msra.mxu0 0.0
    %390 = vmatprep.subr.mxu0 0.0
    %391 = vmatpush1.msra.mxu0 0.0
    %392 = vmatprep.subr.mxu0 0.0
    %393 = vmatpush1.msra.mxu0 0.0
    %394 = vmatprep.subr.mxu0 0.0
    %395 = vmatpush1.msra.mxu0 0.0
    %396 = vmatprep.subr.mxu0 0.0
    %397 = vmatpush1.msra.mxu0 0.0
    %398 = vmatprep.subr.mxu0 0.0
    %399 = vmatpush1.msra.mxu0 0.0
    %400 = vmatprep.subr.mxu0 0.0
    %401 = vmatpush1.msra.mxu0 0.0
    %402 = vmatprep.subr.mxu0 0.0
    %403 = vmatpush1.msra.mxu0 0.0
    %404 = vmatprep.subr.mxu0 0.0
    %405 = vmatpush1.msra.mxu0 0.0
    %406 = vmatprep.subr.mxu0 0.0
    %407 = vmatpush1.msra.mxu0 0.0
    %408 = vmatprep.subr.mxu0 0.0
    %409 = vmatpush1.msra.mxu0 0.0
    %410 = vmatprep.subr.mxu0 0.0
    %411 = vmatpush1.msra.mxu0 0.0
    %412 = vmatprep.subr.mxu0 0.0
    %413 = vmatpush1.msra.mxu0 0.0
    %414 = vmatprep.subr.mxu0 0.0
    %415 = vmatpush1.msra.mxu0 0.0
    %416 = vmatprep.subr.mxu0 0.0
    %417 = vmatpush1.msra.mxu0 0.0
    %418 = vmatprep.subr.mxu0 0.0
    %419 = vmatpush1.msra.mxu0 0.0
    %420 = vmatprep.mubr.f32.mxu0 0.0
    %421 = vmatmul.mubr.f32.gmra.mrb[0].mxu0 %v141
    %v422 = vpop.f32.mrb[0].mxu0
    %v423 = vadd.f32 0.0, %v422
    %v424 = vpop.f32.mrb[0].mxu0
    %v425 = vadd.f32 0.0, %v424
    %426 = vdwg.mxu0
    %427 = vmatprep.subr.mxu0 %v136
    %428 = vmatpush1.msra.mxu0 %v135
    %429 = vmatprep.subr.mxu0 0.0
    %430 = vmatpush1.msra.mxu0 0.0
    %431 = vmatprep.subr.mxu0 0.0
    %432 = vmatpush1.msra.mxu0 0.0
    %433 = vmatprep.subr.mxu0 0.0
    %434 = vmatpush1.msra.mxu0 0.0
    %435 = vmatprep.subr.mxu0 0.0
    %436 = vmatpush1.msra.mxu0 0.0
    %437 = vmatprep.subr.mxu0 0.0
    %438 = vmatpush1.msra.mxu0 0.0
    %439 = vmatprep.subr.mxu0 0.0
    %440 = vmatpush1.msra.mxu0 0.0
    %441 = vmatprep.subr.mxu0 0.0
    %442 = vmatpush1.msra.mxu0 0.0
    %443 = vmatprep.subr.mxu0 0.0
    %444 = vmatpush1.msra.mxu0 0.0
    %445 = vmatprep.subr.mxu0 0.0
    %446 = vmatpush1.msra.mxu0 0.0
    %447 = vmatprep.subr.mxu0 0.0
    %448 = vmatpush1.msra.mxu0 0.0
    %449 = vmatprep.subr.mxu0 0.0
    %450 = vmatpush1.msra.mxu0 0.0
    %451 = vmatprep.subr.mxu0 0.0
    %452 = vmatpush1.msra.mxu0 0.0
    %453 = vmatprep.subr.mxu0 0.0
    %454 = vmatpush1.msra.mxu0 0.0
    %455 = vmatprep.subr.mxu0 0.0
    %456 = vmatpush1.msra.mxu0 0.0
    %457 = vmatprep.subr.mxu0 0.0
    %458 = vmatpush1.msra.mxu0 0.0
    %459 = vmatprep.subr.mxu0 0.0
    %460 = vmatpush1.msra.mxu0 0.0
    %461 = vmatprep.subr.mxu0 0.0
    %462 = vmatpush1.msra.mxu0 0.0
    %463 = vmatprep.subr.mxu0 0.0
    %464 = vmatpush1.msra.mxu0 0.0
    %465 = vmatprep.subr.mxu0 0.0
    %466 = vmatpush1.msra.mxu0 0.0
    %467 = vmatprep.subr.mxu0 0.0
    %468 = vmatpush1.msra.mxu0 0.0
    %469 = vmatprep.subr.mxu0 0.0
    %470 = vmatpush1.msra.mxu0 0.0
    %471 = vmatprep.subr.mxu0 0.0
    %472 = vmatpush1.msra.mxu0 0.0
    %473 = vmatprep.subr.mxu0 0.0
    %474 = vmatpush1.msra.mxu0 0.0
    %475 = vmatprep.subr.mxu0 0.0
    %476 = vmatpush1.msra.mxu0 0.0
    %477 = vmatprep.subr.mxu0 0.0
    %478 = vmatpush1.msra.mxu0 0.0
    %479 = vmatprep.subr.mxu0 0.0
    %480 = vmatpush1.msra.mxu0 0.0
    %481 = vmatprep.subr.mxu0 0.0
    %482 = vmatpush1.msra.mxu0 0.0
    %483 = vmatprep.subr.mxu0 0.0
    %484 = vmatpush1.msra.mxu0 0.0
    %485 = vmatprep.subr.mxu0 0.0
    %486 = vmatpush1.msra.mxu0 0.0
    %487 = vmatprep.subr.mxu0 0.0
    %488 = vmatpush1.msra.mxu0 0.0
    %489 = vmatprep.subr.mxu0 0.0
    %490 = vmatpush1.msra.mxu0 0.0
    %491 = vmatprep.mubr.f32.mxu0 0.0
    %492 = vmatmul.mubr.f32.gmra.mrb[0].mxu0 %v141
    %v493 = vpop.f32.mrb[0].mxu0
    %v494 = vadd.f32 0.0, %v493
    %v495 = vpop.f32.mrb[0].mxu0
    %v496 = vadd.f32 0.0, %v495
    %497 = vdwg.mxu0
    %498 = vmatprep.subr.mxu0 %v138
    %499 = vmatpush1.msra.mxu0 %v137
    %500 = vmatprep.subr.mxu0 0.0
    %501 = vmatpush1.msra.mxu0 0.0
    %502 = vmatprep.subr.mxu0 0.0
    %503 = vmatpush1.msra.mxu0 0.0
    %504 = vmatprep.subr.mxu0 0.0
    %505 = vmatpush1.msra.mxu0 0.0
    %506 = vmatprep.subr.mxu0 0.0
    %507 = vmatpush1.msra.mxu0 0.0
    %508 = vmatprep.subr.mxu0 0.0
    %509 = vmatpush1.msra.mxu0 0.0
    %510 = vmatprep.subr.mxu0 0.0
    %511 = vmatpush1.msra.mxu0 0.0
    %512 = vmatprep.subr.mxu0 0.0
    %513 = vmatpush1.msra.mxu0 0.0
    %514 = vmatprep.subr.mxu0 0.0
    %515 = vmatpush1.msra.mxu0 0.0
    %516 = vmatprep.subr.mxu0 0.0
    %517 = vmatpush1.msra.mxu0 0.0
    %518 = vmatprep.subr.mxu0 0.0
    %519 = vmatpush1.msra.mxu0 0.0
    %520 = vmatprep.subr.mxu0 0.0
    %521 = vmatpush1.msra.mxu0 0.0
    %522 = vmatprep.subr.mxu0 0.0
    %523 = vmatpush1.msra.mxu0 0.0
    %524 = vmatprep.subr.mxu0 0.0
    %525 = vmatpush1.msra.mxu0 0.0
    %526 = vmatprep.subr.mxu0 0.0
    %527 = vmatpush1.msra.mxu0 0.0
    %528 = vmatprep.subr.mxu0 0.0
    %529 = vmatpush1.msra.mxu0 0.0
    %530 = vmatprep.subr.mxu0 0.0
    %531 = vmatpush1.msra.mxu0 0.0
    %532 = vmatprep.subr.mxu0 0.0
    %533 = vmatpush1.msra.mxu0 0.0
    %534 = vmatprep.subr.mxu0 0.0
    %535 = vmatpush1.msra.mxu0 0.0
    %536 = vmatprep.subr.mxu0 0.0
    %537 = vmatpush1.msra.mxu0 0.0
    %538 = vmatprep.subr.mxu0 0.0
    %539 = vmatpush1.msra.mxu0 0.0
    %540 = vmatprep.subr.mxu0 0.0
    %541 = vmatpush1.msra.mxu0 0.0
    %542 = vmatprep.subr.mxu0 0.0
    %543 = vmatpush1.msra.mxu0 0.0
    %544 = vmatprep.subr.mxu0 0.0
    %545 = vmatpush1.msra.mxu0 0.0
    %546 = vmatprep.subr.mxu0 0.0
    %547 = vmatpush1.msra.mxu0 0.0
    %548 = vmatprep.subr.mxu0 0.0
    %549 = vmatpush1.msra.mxu0 0.0
    %550 = vmatprep.subr.mxu0 0.0
    %551 = vmatpush1.msra.mxu0 0.0
    %552 = vmatprep.subr.mxu0 0.0
    %553 = vmatpush1.msra.mxu0 0.0
    %554 = vmatprep.subr.mxu0 0.0
    %555 = vmatpush1.msra.mxu0 0.0
    %556 = vmatprep.subr.mxu0 0.0
    %557 = vmatpush1.msra.mxu0 0.0
    %558 = vmatprep.subr.mxu0 0.0
    %559 = vmatpush1.msra.mxu0 0.0
    %560 = vmatprep.subr.mxu0 0.0
    %561 = vmatpush1.msra.mxu0 0.0
    %562 = vmatprep.mubr.f32.mxu0 0.0
    %563 = vmatmul.mubr.f32.gmra.mrb[0].mxu0 %v141
    %v564 = vpop.f32.mrb[0].mxu0
    %v565 = vadd.f32 0.0, %v564
    %v566 = vpop.f32.mrb[0].mxu0
    %v567 = vadd.f32 0.0, %v566
    %568 = vdwg.mxu0
    %569 = vst [vmem:[#allocation7] sm:$0xff] %v210
    %570 = vst [vmem:[#allocation7 + $0x8] sm:$0xff] %v212
    %571 = vst [vmem:[#allocation7 + $0x10] sm:$0xff] %v281
    %572 = vst [vmem:[#allocation7 + $0x18] sm:$0xff] %v283
    %573 = vst [vmem:[#allocation7 + $0x20] sm:$0xff] %v352
    %574 = vst [vmem:[#allocation7 + $0x28] sm:$0xff] %v354
    %575 = vst [vmem:[#allocation7 + $0x30] sm:$0xff] %v423
    %576 = vst [vmem:[#allocation7 + $0x38] sm:$0xff] %v425
    %577 = vst [vmem:[#allocation7 + $0x40] sm:$0xff] %v494
    %578 = vst [vmem:[#allocation7 + $0x48] sm:$0xff] %v496
    %579 = vst [vmem:[#allocation7 + $0x50] sm:$0xff] %v565
    %580 = vst [vmem:[#allocation7 + $0x58] sm:$0xff] %v567
    // Predicated region
    $region26: #{tpu_custom_call.1} parent=1 // pred_check
      _
    $region27: #{tpu_custom_call.1} parent=1 // pred_check_branch
      %582 = sbr.rel (0) target = $region29
    $region28: #{tpu_custom_call.1} parent=1 // pred_region
      %s584 = ssub.s32 128, 128
      %585 = vsyncadd [#allocation5], %s584
      %s587 = sshll.u32 [#allocation6], 4
      %s588 = int_to_ptr.vmem [resolvable:$true] %s587
      %590 = dma.vmem_to_hbm [thread:$0]  %s588, 128, %s4, [#allocation5]
    $region29: #{tpu_custom_call.1} parent=1 // pred_fallthru
      _
    // Predicated region
    $region30: #{tpu_custom_call.1} parent=1 // pred_check
      _
    $region31: #{tpu_custom_call.1} parent=1 // pred_check_branch
      %592 = sbr.rel (0) target = $region33
    $region32: #{tpu_custom_call.1} parent=1 // pred_region
      %s594 = ssub.s32 1536, 1536
      %595 = vsyncadd [#allocation8], %s594
      %s597 = sshll.u32 [#allocation7], 4
      %s598 = int_to_ptr.vmem [resolvable:$true] %s597
      %600 = dma.vmem_to_hbm [thread:$0]  %s598, 1536, %s5, [#allocation8]
    $region33: #{tpu_custom_call.1} parent=1 // pred_fallthru
      _
    // Predicated region
    $region34: #{tpu_custom_call.1} parent=1 // pred_check
      _
    $region35: #{tpu_custom_call.1} parent=1 // pred_check_branch
      %602 = sbr.rel (0) target = $region37
    $region36: #{tpu_custom_call.1} parent=1 // pred_region
      %603 = dma.done [#allocation5], 128
    $region37: #{tpu_custom_call.1} parent=1 // pred_fallthru
      _
    // Predicated region
    $region38: #{tpu_custom_call.1} parent=1 // pred_check
      _
    $region39: #{tpu_custom_call.1} parent=1 // pred_check_branch
      %605 = sbr.rel (0) target = $region41
    $region40: #{tpu_custom_call.1} parent=1 // pred_region
      %606 = dma.done [#allocation8], 1536
    $region41: #{tpu_custom_call.1} parent=1 // pred_fallthru
      _
    %607 = vsyncpa [#allocation4], 1
    %608 = vsyncpa [#allocation5], 1
    %609 = vsyncpa [#allocation8], 1

</llo_original>
